<compile_context>
chip_gen: v7x
topology: tpu7x:2x2x1
jax: 0.10.0
libtpu: 0.0.40
codegen_flags: <defaults>
</compile_context>

<pallas_src>
import jax
import jax.numpy as jnp
from jax.experimental import pallas as pl
from jax.experimental.pallas import tpu as pltpu

_TARGET_BLOCK_BYTES = 2 << 20   # ~2 MiB per x/out block (memory-bound sweet spot)
_VMEM_LIMIT_CAP = 48 << 20      # stay safely under v7x's 64 MiB physical VMEM


def _scale_noize_kernel(x_ref, w_ref, o_ref):
    # x_ref: (ROW_TILE, HW)   w_ref: (ROW_TILE, 1)   o_ref: (ROW_TILE, HW)
    x = x_ref[...].astype(jnp.float32)
    w = w_ref[...].astype(jnp.float32)
    o_ref[...] = (x * w).astype(o_ref.dtype)


def _pick_row_tile(rows, hw, itemsize):
    """Largest row tile giving ~_TARGET_BLOCK_BYTES blocks, respecting the
    dtype's minimum sublane multiple (8 for 4B, 16 for 2B, 32 for 1B)."""
    sub = max(8, 32 // max(int(itemsize), 1))
    t = max(_TARGET_BLOCK_BYTES // (hw * itemsize), sub)
    t = (t // sub) * sub
    rows_up = ((rows + sub - 1) // sub) * sub   # no point exceeding the row count
    return int(min(t, rows_up))


def scale_noize(noise, weight):
    """noise: (N, C, H, W); weight: (1, C, 1, 1) or (C,).  Returns noise * weight."""
    N, C, H, W = noise.shape
    w = weight.reshape(-1)
    assert w.shape[0] == C, "weight must have C channels"

    rows = N * C
    hw = H * W
    x2 = noise.reshape(rows, hw)
    # per-row scale: row n*C + c -> weight[c]
    w2 = jnp.broadcast_to(w[None, :], (N, C)).reshape(rows, 1)

    itemsize = jnp.dtype(noise.dtype).itemsize
    row_tile = _pick_row_tile(rows, hw, itemsize)
    block_bytes = row_tile * hw * itemsize
    # double-buffered x + out blocks (+ tiny scale tiles), with headroom
    vmem_limit = int(min(max(32 << 20, 4 * block_bytes + (1 << 20)), _VMEM_LIMIT_CAP))

    out = pl.pallas_call(
        _scale_noize_kernel,
        out_shape=jax.ShapeDtypeStruct((rows, hw), noise.dtype),
        grid_spec=pltpu.PrefetchScalarGridSpec(
            num_scalar_prefetch=0,
            grid=(pl.cdiv(rows, row_tile),),
            in_specs=[
                pl.BlockSpec((row_tile, hw), lambda i: (i, 0)),
                pl.BlockSpec((row_tile, 1), lambda i: (i, 0)),
            ],
            out_specs=pl.BlockSpec((row_tile, hw), lambda i: (i, 0)),
        ),
        compiler_params=pltpu.CompilerParams(
            dimension_semantics=("parallel",),
            vmem_limit_bytes=vmem_limit,
        ),
    )(x2, w2)

    return out.reshape(N, C, H, W)


def _scale_noize_ref(noise, weight):
    """Pure-JAX reference matching PyTorch semantics."""
    N, C, H, W = noise.shape
    w = weight.reshape(1, C, 1, 1)
    return (noise.astype(jnp.float32) * w.astype(jnp.float32)).astype(noise.dtype)


if __name__ == "__main__":
    key = jax.random.PRNGKey(0)
    k1, k2 = jax.random.split(key)

    N, C, H, W = 2, 4, 16, 16
    noise = jax.random.normal(k1, (N, C, H, W), dtype=jnp.float32)
    # The module initializes weight to zeros; use random values here so the
    # correctness check is non-trivial.
    weight = jax.random.normal(k2, (1, C, 1, 1), dtype=jnp.float32)

    out = scale_noize(noise, weight)
    out = jax.block_until_ready(out)

    ref = _scale_noize_ref(noise, weight)
    assert out.shape == (N, C, H, W)
    assert jnp.allclose(out, ref, atol=1e-6, rtol=1e-6), "mismatch vs reference"

    print("KERNEL_OK")
</pallas_src>

<mosaic_0001>
module attributes {stable_mosaic.version = 11 : i64} {
  func.func @_scale_noize_kernel(%arg0: i32, %arg1: memref<8x256xf32, #tpu.memory_space<vmem>>, %arg2: memref<8x1xf32, #tpu.memory_space<vmem>>, %arg3: memref<8x256xf32, #tpu.memory_space<vmem>>) attributes {dimension_semantics = [#tpu.dimension_semantics<parallel>], iteration_bounds = array<i64: 1>, scalar_prefetch = 0 : i64, scratch_operands = 0 : i64, tpu.core_type = #tpu.core_type<tc>, window_params = [{transform_indices = @transform_0, window_bounds = array<i64: 8, 256>}, {transform_indices = @transform_1, window_bounds = array<i64: 8, 1>}, {transform_indices = @transform_2, window_bounds = array<i64: 8, 256>}]} {
    %c0 = arith.constant 0 : index
    %c0_0 = arith.constant 0 : index
    %0 = vector.load %arg1[%c0, %c0_0] : memref<8x256xf32, #tpu.memory_space<vmem>>, vector<8x256xf32>
    %c0_1 = arith.constant 0 : index
    %c0_2 = arith.constant 0 : index
    %1 = vector.load %arg2[%c0_1, %c0_2] : memref<8x1xf32, #tpu.memory_space<vmem>>, vector<8x1xf32>
    %2 = vector.broadcast %1 : vector<8x1xf32> to vector<8x256xf32>
    %3 = arith.mulf %0, %2 : vector<8x256xf32>
    %c0_3 = arith.constant 0 : index
    %c0_4 = arith.constant 0 : index
    %4 = vector.load %arg3[%c0_3, %c0_4] : memref<8x256xf32, #tpu.memory_space<vmem>>, vector<8x256xf32>
    tpu.vector_store %arg3[%c0_3, %c0_4], %3 {strides = array<i32>} : memref<8x256xf32, #tpu.memory_space<vmem>>, vector<8x256xf32>,
    return
  }
  func.func @transform_0(%arg0: i32) -> (i32, i32) {
    %c0_i32 = arith.constant 0 : i32
    %c0_i32_0 = arith.constant 0 : i32
    return %arg0, %c0_i32 : i32, i32
  }
  func.func @transform_1(%arg0: i32) -> (i32, i32) {
    %c0_i32 = arith.constant 0 : i32
    %c0_i32_0 = arith.constant 0 : i32
    return %arg0, %c0_i32 : i32, i32
  }
  func.func @transform_2(%arg0: i32) -> (i32, i32) {
    %c0_i32 = arith.constant 0 : i32
    %c0_i32_0 = arith.constant 0 : i32
    return %arg0, %c0_i32 : i32, i32
  }
}

</mosaic_0001>

<llo_original>
// kernel: tpu_custom_call.1
$region0: #{tpu_custom_call.1}
  #allocation0 [shape = 'u32[]', space=smem, size = 0x4, offset = 0x4, fixed_abs, tag = 'smem constant byte address 0x4 - core index']
  #allocation1 [shape = 'u32[144,128]{1,0:T(1,128)}', space=vmem, size = 0x12000, scoped, tag = 'internal scratch']
  %s0 = inlined_call_operand.hbm [shape: f32[8,256], index: 0, kind: input, shape index: {}]
  %s1 = inlined_call_operand.vmem [shape: f32[8,1], index: 1, kind: input, shape index: {}]
  %s2 = inlined_call_operand.hbm [shape: f32[8,256], index: 2, kind: output, shape index: {}]
  %s3 = sld [smem:[#allocation0]]
  $region22: #{tpu_custom_call.1} parent=0
    _
  %s5 = ssub.s32 1, %s3
  %s6 = scalar_select 0, %s5, %s3
  $region1: #{tpu_custom_call.1} parent=0
    #allocation2 [shape = 'u8[8192]{0}', space=vmem, size = 0x2000, scoped, tag = 'input window, operand 0, single buffered']
    #allocation3 [shape = 's32[1]{0}', space=sflag, size = 0x4, scoped, tag = 'scoped memory for tpu_custom_call.1']
    #allocation4 [shape = 's32[1]{0}', space=sflag, size = 0x4, scoped, tag = 'scoped memory for tpu_custom_call.1']
    #allocation5 [shape = 'u8[8192]{0}', space=vmem, size = 0x2000, scoped, tag = 'output window, operand 0, single buffered']
    %7 = vsyncpa [#allocation3], 0
    %8 = vsyncpa [#allocation4], 0
    // Predicated region
    $region2: #{tpu_custom_call.1} parent=1 // pred_check
      _
    $region3: #{tpu_custom_call.1} parent=1 // pred_check_branch
      %10 = sbr.rel (0) target = $region5
    $region4: #{tpu_custom_call.1} parent=1 // pred_region
      %s12 = ssub.s32 256, 256
      %13 = vsyncadd [#allocation3], %s12
      %s15 = sshll.u32 [#allocation2], 4
      %s16 = int_to_ptr.vmem [resolvable:$true] %s15
      %18 = dma.hbm_to_vmem [thread:$0]  %s0, 256, %s16, [#allocation3]
    $region5: #{tpu_custom_call.1} parent=1 // pred_fallthru
      _
    // Predicated region
    $region6: #{tpu_custom_call.1} parent=1 // pred_check
      _
    $region7: #{tpu_custom_call.1} parent=1 // pred_check_branch
      %20 = sbr.rel (0) target = $region9
    $region8: #{tpu_custom_call.1} parent=1 // pred_region
      _
    $region9: #{tpu_custom_call.1} parent=1 // pred_fallthru
      _
    // Predicated region
    $region10: #{tpu_custom_call.1} parent=1 // pred_check
      _
    $region11: #{tpu_custom_call.1} parent=1 // pred_check_branch
      %22 = sbr.rel (0) target = $region13
    $region12: #{tpu_custom_call.1} parent=1 // pred_region
      %23 = dma.done [#allocation3], 256
    $region13: #{tpu_custom_call.1} parent=1 // pred_fallthru
      _
    %v24 = vld [vmem:[#allocation2] sm:$0xff]
    %v25 = vld [vmem:[#allocation2 + $0x8] sm:$0xff]
    %v26 = vld [vmem:[%s1] sm:$0xff]
    %28 = vset.pattern.permute.xlu0 0
    %29 = vperm.xlu0 %28, %v26
    %v30 = vpop.permute.xlu0 %29
    %v32 = vmul.f32 %v24, %v30
    %v33 = vmul.f32 %v25, %v30
    %34 = vst [vmem:[#allocation5] sm:$0xff] %v32
    %35 = vst [vmem:[#allocation5 + $0x8] sm:$0xff] %v33
    // Predicated region
    $region14: #{tpu_custom_call.1} parent=1 // pred_check
      _
    $region15: #{tpu_custom_call.1} parent=1 // pred_check_branch
      %37 = sbr.rel (0) target = $region17
    $region16: #{tpu_custom_call.1} parent=1 // pred_region
      %s39 = ssub.s32 256, 256
      %40 = vsyncadd [#allocation4], %s39
      %s42 = sshll.u32 [#allocation5], 4
      %s43 = int_to_ptr.vmem [resolvable:$true] %s42
      %45 = dma.vmem_to_hbm [thread:$0]  %s43, 256, %s2, [#allocation4]
    $region17: #{tpu_custom_call.1} parent=1 // pred_fallthru
      _
    // Predicated region
    $region18: #{tpu_custom_call.1} parent=1 // pred_check
      _
    $region19: #{tpu_custom_call.1} parent=1 // pred_check_branch
      %47 = sbr.rel (0) target = $region21
    $region20: #{tpu_custom_call.1} parent=1 // pred_region
      %48 = dma.done [#allocation4], 256
    $region21: #{tpu_custom_call.1} parent=1 // pred_fallthru
      _
    %49 = vsyncpa [#allocation3], 1
    %50 = vsyncpa [#allocation4], 1

</llo_original>
